<compile_context>
chip_gen: v7x
topology: tpu7x:2x2x1
jax: 0.10.0
libtpu: 0.0.40
codegen_flags: <defaults>
</compile_context>

<pallas_src>
import functools
import math

import jax
import jax.numpy as jnp
from jax.experimental import pallas as pl
from jax.experimental.pallas import tpu as pltpu

_INV_LN10 = 0.4342944819032518


def _snr_loss_kernel(x_ref, y_ref, loss_ref, *, window_size):
    # x_ref / y_ref: (TB, N) blocks of predicted / target FFT magnitudes.
    x = x_ref[...].astype(jnp.float32)
    y = y_ref[...].astype(jnp.float32)

    TB, N = x.shape

    X2 = x * x
    # argmax over frequency of |y| == argmax of |y|^2 (monotone on >=0);
    # avoids materializing an extra full-tile Y2 live value.
    ay = jnp.abs(y)

    lane_idx = jax.lax.broadcasted_iota(jnp.int32, (TB, N), 1)

    # first-occurrence argmax over the frequency axis (matches torch.argmax)
    max_y = jnp.max(ay, axis=1, keepdims=True)
    ref_idx = jnp.min(jnp.where(ay == max_y, lane_idx, N), axis=1, keepdims=True)

    # window bounds: [max(0, ref-w), ref+w+1); upper bound implicitly clipped
    # by the lane index range, matching python slicing semantics.
    base_start = jnp.maximum(0, ref_idx - window_size)
    base_end = ref_idx + window_size + 1
    in_window = (lane_idx >= base_start) & (lane_idx < base_end)

    pulse = jnp.sum(jnp.where(in_window, X2, 0.0), axis=1, keepdims=True)
    total = jnp.sum(X2, axis=1, keepdims=True)
    other = total - pulse

    losses = -10.0 * (jnp.log(pulse / (other + 1e-7)) * _INV_LN10)  # (TB, 1)
    # Lane-dense write: broadcast each row's loss across the 128-lane slab.
    loss_ref[...] = jnp.broadcast_to(losses, loss_ref.shape)


def snr_loss_on_windowed_fft(outputs, targets, *, window_fraction=0.02,
                             start_idx=0, block_bytes=2 * 1024 * 1024):
    # start_idx kept for API parity with the torch module (unused in forward).
    del start_idx
    assert outputs.shape == targets.shape, (
        "The predicted output and the target labels have different shapes")
    B, N = outputs.shape
    window_size = int(window_fraction * N) + 1
    itemsize = jnp.dtype(outputs.dtype).itemsize

    # Batch tile: largest multiple of 8 whose (TB, N) input block stays under
    # `block_bytes` (the pipeliner double-buffers each input block).
    rows_cap = max(8, (block_bytes // max(1, N * itemsize)) // 8 * 8)
    if B <= rows_cap:
        TB = B            # single block; block shape == full array dims
        B_pad = B
    else:
        TB = int(rows_cap)
        B_pad = math.ceil(B / TB) * TB
    # TODO(synk): if N is so large that even an 8-row block overflows VMEM, a
    # two-level grid (batch "parallel", frequency "arbitrary" with running
    # argmax + second windowed pass) would be needed.

    if B_pad != B:
        pad = B_pad - B
        # Zero-padded rows produce +inf losses that are sliced off below.
        outputs = jnp.pad(outputs, ((0, pad), (0, 0)))
        targets = jnp.pad(targets, ((0, pad), (0, 0)))

    num_blocks = B_pad // TB
    kernel = functools.partial(_snr_loss_kernel, window_size=window_size)

    per_row = pl.pallas_call(
        kernel,
        out_shape=jax.ShapeDtypeStruct((B_pad, 128), jnp.float32),
        grid=(num_blocks,),
        in_specs=[
            pl.BlockSpec((TB, N), lambda i: (i, 0)),
            pl.BlockSpec((TB, N), lambda i: (i, 0)),
        ],
        out_specs=pl.BlockSpec((TB, 128), lambda i: (i, 0)),
        compiler_params=pltpu.CompilerParams(
            dimension_semantics=("parallel",),
            vmem_limit_bytes=32 * 1024 * 1024,
        ),
        cost_estimate=pl.CostEstimate(
            flops=6 * B_pad * N,
            transcendentals=B_pad,
            bytes_accessed=2 * B_pad * N * itemsize + B_pad * 128 * 4,
        ),
    )(outputs, targets)

    return jnp.mean(per_row[:B, 0])


def _reference(outputs, targets, window_fraction=0.02):
    # pure-JAX reference mirroring the torch loop, for a sanity check
    B, N = outputs.shape
    w = int(window_fraction * N) + 1
    Y2 = jnp.abs(targets.astype(jnp.float32)) ** 2
    X2 = jnp.abs(outputs.astype(jnp.float32)) ** 2
    ref_idx = jnp.argmax(Y2, axis=1)
    idx = jnp.arange(N)[None, :]
    base_start = jnp.maximum(0, ref_idx - w)[:, None]
    base_end = (ref_idx + w + 1)[:, None]
    mask = (idx >= base_start) & (idx < base_end)
    pulse = jnp.sum(jnp.where(mask, X2, 0.0), axis=1)
    other = jnp.sum(X2, axis=1) - pulse
    losses = -10.0 * jnp.log10(pulse / (other + 1e-7))
    return jnp.mean(losses)


if __name__ == "__main__":
    key = jax.random.PRNGKey(0)

    # Case 1: small batch, single block (TB == B).
    k1, k2 = jax.random.split(key)
    B, N = 8, 256
    outputs = jax.random.normal(k1, (B, N), dtype=jnp.float32)
    targets = jax.random.normal(k2, (B, N), dtype=jnp.float32)
    loss = jax.block_until_ready(
        snr_loss_on_windowed_fft(outputs, targets, window_fraction=0.02))
    ref = jax.block_until_ready(_reference(outputs, targets, 0.02))
    assert jnp.allclose(loss, ref, rtol=1e-5, atol=1e-5), (loss, ref)

    # Case 2: non-divisible batch + tiny block budget to exercise the tiled /
    # padded / multi-block ("parallel" grid) path.
    k3, k4 = jax.random.split(k1)
    B2, N2 = 20, 256
    outputs2 = jax.random.normal(k3, (B2, N2), dtype=jnp.float32)
    targets2 = jax.random.normal(k4, (B2, N2), dtype=jnp.float32)
    loss2 = jax.block_until_ready(
        snr_loss_on_windowed_fft(outputs2, targets2, window_fraction=0.02,
                                 block_bytes=8 * N2 * 4))
    ref2 = jax.block_until_ready(_reference(outputs2, targets2, 0.02))
    assert jnp.allclose(loss2, ref2, rtol=1e-5, atol=1e-5), (loss2, ref2)

    print("KERNEL_OK")
</pallas_src>

<mosaic_0001>
module attributes {stable_mosaic.version = 11 : i64} {
  func.func @_snr_loss_kernel(%arg0: i32, %arg1: memref<8x256xf32, #tpu.memory_space<vmem>>, %arg2: memref<8x256xf32, #tpu.memory_space<vmem>>, %arg3: memref<8x128xf32, #tpu.memory_space<vmem>>) attributes {dimension_semantics = [#tpu.dimension_semantics<parallel>], iteration_bounds = array<i64: 1>, scalar_prefetch = 0 : i64, scratch_operands = 0 : i64, tpu.core_type = #tpu.core_type<tc>, window_params = [{transform_indices = @transform_0, window_bounds = array<i64: 8, 256>}, {transform_indices = @transform_1, window_bounds = array<i64: 8, 256>}, {transform_indices = @transform_2, window_bounds = array<i64: 8, 128>}]} {
    %c0 = arith.constant 0 : index
    %c0_0 = arith.constant 0 : index
    %0 = vector.load %arg1[%c0, %c0_0] : memref<8x256xf32, #tpu.memory_space<vmem>>, vector<8x256xf32>
    %c0_1 = arith.constant 0 : index
    %c0_2 = arith.constant 0 : index
    %1 = vector.load %arg2[%c0_1, %c0_2] : memref<8x256xf32, #tpu.memory_space<vmem>>, vector<8x256xf32>
    %2 = arith.mulf %0, %0 : vector<8x256xf32>
    %3 = math.absf %1 : vector<8x256xf32>
    %4 = tpu.iota {dimensions = array<i32: 1>} : vector<8x256xi32>
    %cst = arith.constant dense<0xFF800000> : vector<8xf32>
    %5 = vector.multi_reduction <maximumf>, %3, %cst [1] : vector<8x256xf32> to vector<8xf32>
    %6 = vector.shape_cast %5 : vector<8xf32> to vector<8x1xf32>
    %7 = vector.broadcast %6 : vector<8x1xf32> to vector<8x256xf32>
    %8 = arith.cmpf oeq, %3, %7 : vector<8x256xf32>
    %c256_i32 = arith.constant 256 : i32
    %9 = vector.broadcast %c256_i32 : i32 to vector<8x256xi32>
    %10 = arith.select %8, %4, %9 : vector<8x256xi1>, vector<8x256xi32>
    %cst_3 = arith.constant dense<2147483647> : vector<8xi32>
    %11 = vector.multi_reduction <minsi>, %10, %cst_3 [1] : vector<8x256xi32> to vector<8xi32>
    %12 = vector.shape_cast %11 : vector<8xi32> to vector<8x1xi32>
    %c6_i32 = arith.constant 6 : i32
    %13 = vector.broadcast %c6_i32 : i32 to vector<8x1xi32>
    %14 = arith.subi %12, %13 : vector<8x1xi32>
    %c0_i32 = arith.constant 0 : i32
    %15 = vector.broadcast %c0_i32 : i32 to vector<8x1xi32>
    %16 = arith.maxsi %15, %14 : vector<8x1xi32>
    %c6_i32_4 = arith.constant 6 : i32
    %17 = vector.broadcast %c6_i32_4 : i32 to vector<8x1xi32>
    %18 = arith.addi %12, %17 : vector<8x1xi32>
    %c1_i32 = arith.constant 1 : i32
    %19 = vector.broadcast %c1_i32 : i32 to vector<8x1xi32>
    %20 = arith.addi %18, %19 : vector<8x1xi32>
    %21 = vector.broadcast %16 : vector<8x1xi32> to vector<8x256xi32>
    %22 = arith.cmpi sge, %4, %21 : vector<8x256xi32>
    %23 = vector.broadcast %20 : vector<8x1xi32> to vector<8x256xi32>
    %24 = arith.cmpi slt, %4, %23 : vector<8x256xi32>
    %25 = arith.andi %22, %24 : vector<8x256xi1>
    %cst_5 = arith.constant 0.000000e+00 : f32
    %26 = vector.broadcast %cst_5 : f32 to vector<8x256xf32>
    %27 = arith.select %25, %2, %26 : vector<8x256xi1>, vector<8x256xf32>
    %cst_6 = arith.constant dense<0.000000e+00> : vector<8xf32>
    %28 = vector.multi_reduction <add>, %27, %cst_6 [1] : vector<8x256xf32> to vector<8xf32>
    %29 = vector.shape_cast %28 : vector<8xf32> to vector<8x1xf32>
    %cst_7 = arith.constant dense<0.000000e+00> : vector<8xf32>
    %30 = vector.multi_reduction <add>, %2, %cst_7 [1] : vector<8x256xf32> to vector<8xf32>
    %31 = vector.shape_cast %30 : vector<8xf32> to vector<8x1xf32>
    %32 = arith.subf %31, %29 : vector<8x1xf32>
    %cst_8 = arith.constant 1.000000e-07 : f32
    %33 = vector.broadcast %cst_8 : f32 to vector<8x1xf32>
    %34 = arith.addf %32, %33 : vector<8x1xf32>
    %35 = arith.divf %29, %34 : vector<8x1xf32>
    %36 = math.log %35 : vector<8x1xf32>
    %cst_9 = arith.constant 0.434294492 : f32
    %37 = vector.broadcast %cst_9 : f32 to vector<8x1xf32>
    %38 = arith.mulf %36, %37 : vector<8x1xf32>
    %cst_10 = arith.constant -1.000000e+01 : f32
    %39 = vector.broadcast %cst_10 : f32 to vector<8x1xf32>
    %40 = arith.mulf %39, %38 : vector<8x1xf32>
    %41 = vector.shape_cast %40 : vector<8x1xf32> to vector<8x1xf32>
    %42 = vector.broadcast %41 : vector<8x1xf32> to vector<8x128xf32>
    %c0_11 = arith.constant 0 : index
    %c0_12 = arith.constant 0 : index
    %43 = vector.load %arg3[%c0_11, %c0_12] : memref<8x128xf32, #tpu.memory_space<vmem>>, vector<8x128xf32>
    tpu.vector_store %arg3[%c0_11, %c0_12], %42 {strides = array<i32>} : memref<8x128xf32, #tpu.memory_space<vmem>>, vector<8x128xf32>,
    return
  }
  func.func @transform_0(%arg0: i32) -> (i32, i32) {
    %c0_i32 = arith.constant 0 : i32
    %c0_i32_0 = arith.constant 0 : i32
    return %arg0, %c0_i32 : i32, i32
  }
  func.func @transform_1(%arg0: i32) -> (i32, i32) {
    %c0_i32 = arith.constant 0 : i32
    %c0_i32_0 = arith.constant 0 : i32
    return %arg0, %c0_i32 : i32, i32
  }
  func.func @transform_2(%arg0: i32) -> (i32, i32) {
    %c0_i32 = arith.constant 0 : i32
    %c0_i32_0 = arith.constant 0 : i32
    return %arg0, %c0_i32 : i32, i32
  }
}

</mosaic_0001>

<llo_original>
// kernel: tpu_custom_call.1
$region0: #{tpu_custom_call.1}
  #allocation0 [shape = 'u32[]', space=smem, size = 0x4, offset = 0x4, fixed_abs, tag = 'smem constant byte address 0x4 - core index']
  #allocation1 [shape = 'u32[144,128]{1,0:T(1,128)}', space=vmem, size = 0x12000, scoped, tag = 'internal scratch']
  %s0 = inlined_call_operand.hbm [shape: f32[8,256], index: 0, kind: input, shape index: {}]
  %s1 = inlined_call_operand.hbm [shape: f32[8,256], index: 1, kind: input, shape index: {}]
  %s2 = inlined_call_operand.hbm [shape: f32[8,128], index: 2, kind: output, shape index: {}]
  %s3 = sld [smem:[#allocation0]]
  $region26: #{tpu_custom_call.1} parent=0
    _
  %s5 = ssub.s32 1, %s3
  %s6 = scalar_select 0, %s5, %s3
  $region1: #{tpu_custom_call.1} parent=0
    #allocation2 [shape = 'u8[8192]{0}', space=vmem, size = 0x2000, scoped, tag = 'input window, operand 0, single buffered']
    #allocation3 [shape = 's32[1]{0}', space=sflag, size = 0x4, scoped, tag = 'scoped memory for tpu_custom_call.1']
    #allocation4 [shape = 's32[1]{0}', space=sflag, size = 0x4, scoped, tag = 'scoped memory for tpu_custom_call.1']
    #allocation5 [shape = 'u8[8192]{0}', space=vmem, size = 0x2000, scoped, tag = 'input window, operand 1, single buffered']
    #allocation6 [shape = 's32[1]{0}', space=sflag, size = 0x4, scoped, tag = 'scoped memory for tpu_custom_call.1']
    #allocation7 [shape = 'u8[4096]{0}', space=vmem, size = 0x1000, scoped, tag = 'output window, operand 0, single buffered']
    %7 = vsyncpa [#allocation3], 0
    %8 = vsyncpa [#allocation6], 0
    %9 = vsyncpa [#allocation4], 0
    // Predicated region
    $region2: #{tpu_custom_call.1} parent=1 // pred_check
      _
    $region3: #{tpu_custom_call.1} parent=1 // pred_check_branch
      %11 = sbr.rel (0) target = $region5
    $region4: #{tpu_custom_call.1} parent=1 // pred_region
      %s13 = ssub.s32 256, 256
      %14 = vsyncadd [#allocation3], %s13
      %s16 = sshll.u32 [#allocation2], 4
      %s17 = int_to_ptr.vmem [resolvable:$true] %s16
      %19 = dma.hbm_to_vmem [thread:$0]  %s0, 256, %s17, [#allocation3]
    $region5: #{tpu_custom_call.1} parent=1 // pred_fallthru
      _
    // Predicated region
    $region6: #{tpu_custom_call.1} parent=1 // pred_check
      _
    $region7: #{tpu_custom_call.1} parent=1 // pred_check_branch
      %21 = sbr.rel (0) target = $region9
    $region8: #{tpu_custom_call.1} parent=1 // pred_region
      %s23 = ssub.s32 256, 256
      %24 = vsyncadd [#allocation6], %s23
      %s26 = sshll.u32 [#allocation5], 4
      %s27 = int_to_ptr.vmem [resolvable:$true] %s26
      %29 = dma.hbm_to_vmem [thread:$0]  %s1, 256, %s27, [#allocation6]
    $region9: #{tpu_custom_call.1} parent=1 // pred_fallthru
      _
    // Predicated region
    $region10: #{tpu_custom_call.1} parent=1 // pred_check
      _
    $region11: #{tpu_custom_call.1} parent=1 // pred_check_branch
      %31 = sbr.rel (0) target = $region13
    $region12: #{tpu_custom_call.1} parent=1 // pred_region
      %32 = dma.done [#allocation3], 256
    $region13: #{tpu_custom_call.1} parent=1 // pred_fallthru
      _
    // Predicated region
    $region14: #{tpu_custom_call.1} parent=1 // pred_check
      _
    $region15: #{tpu_custom_call.1} parent=1 // pred_check_branch
      %34 = sbr.rel (0) target = $region17
    $region16: #{tpu_custom_call.1} parent=1 // pred_region
      %35 = dma.done [#allocation6], 256
    $region17: #{tpu_custom_call.1} parent=1 // pred_fallthru
      _
    %v36 = vld [vmem:[#allocation2] sm:$0xff]
    %v37 = vld [vmem:[#allocation2 + $0x8] sm:$0xff]
    %v38 = vld [vmem:[#allocation5] sm:$0xff]
    %v39 = vld [vmem:[#allocation5 + $0x8] sm:$0xff]
    %v40 = vmul.f32 %v36, %v36
    %v41 = vmul.f32 %v37, %v37
    %v42 = vand.u32 2147483647, %v38
    %v43 = vand.u32 2147483647, %v39
    %v44 = vlaneseq
    %v45 = vand.u32 %v44, 127
    %v46 = vadd.s32 %v45, 128
    %v47 = vmax.f32 %v42, %v43
    %48 = vmax.xlane.f32.xlu0 %v47
    %v49 = vpop.xlane.xlu0 %48
    %vm50 = vcmp.eq.f32.partialorder %v42, %v49
    %vm51 = vcmp.eq.f32.partialorder %v43, %v49
    %v52 = vsel %vm50, %v45, 256
    %v53 = vsel %vm51, %v46, 256
    %vm54 = vcmp.lt.s32.totalorder %v52, %v53
    %v55 = vsel %vm54, %v52, %v53
    %v56 = vand.u32 %v55, 65535
    %v57 = vshra.s32 %v55, 16
    %v58 = vcvt.s32.f32 %v56
    %v59 = vcvt.s32.f32 %v57
    %60 = vmin.xlane.f32.xlu0 %v59
    %v61 = vpop.xlane.xlu0 %60
    %vm62 = vcmp.eq.f32.partialorder %v59, %v61
    %v63 = vsel %vm62, %v58, inf
    %64 = vmin.xlane.f32.xlu0 %v63
    %v65 = vpop.xlane.xlu0 %64
    %v66 = vcvt.f32.s32 %v65
    %v67 = vcvt.f32.s32 %v61
    %v68 = vshll.u32 %v67, 16
    %v69 = vadd.s32 %v68, %v66
    %v70 = vsub.s32 %v69, 6
    %vm71 = vcmp.gt.s32.totalorder %v70, 0
    %v72 = vsel %vm71, %v70, 0
    %v73 = vadd.s32 %v69, 6
    %v74 = vadd.s32 %v73, 1
    %vm75 = vcmp.ge.s32.totalorder %v45, %v72
    %vm76 = vcmp.ge.s32.totalorder %v46, %v72
    %vm77 = vcmp.lt.s32.totalorder %v45, %v74
    %vm78 = vcmp.lt.s32.totalorder %v46, %v74
    %vm79 = vmand %vm75, %vm77
    %vm80 = vmand %vm76, %vm78
    %v81 = vsel %vm79, %v40, 0.0
    %v82 = vsel %vm80, %v41, 0.0
    %v83 = vadd.f32 %v81, %v82
    %84 = vadd.xlane.f32.xlu0 %v83
    %v85 = vpop.xlane.xlu0 %84
    %v86 = vadd.f32 %v40, %v41
    %87 = vadd.xlane.f32.xlu0 %v86
    %v88 = vpop.xlane.xlu0 %87
    %v89 = vsub.f32 %v88, %v85
    %v90 = vadd.f32 %v89, 1e-07
    %v91 = vrcp.pop %v90
    %v92 = vmul.f32 %v85, %v91
    %v93 = vlog2.pop %v92
    %v94 = vmul.f32 %v93, 0.6931472
    %v95 = vmul.f32 %v94, 0.4342945
    %v96 = vmul.f32 %v95, -10.0
    %97 = vst [vmem:[#allocation7] sm:$0xff] %v96
    // Predicated region
    $region18: #{tpu_custom_call.1} parent=1 // pred_check
      _
    $region19: #{tpu_custom_call.1} parent=1 // pred_check_branch
      %99 = sbr.rel (0) target = $region21
    $region20: #{tpu_custom_call.1} parent=1 // pred_region
      %s101 = ssub.s32 128, 128
      %102 = vsyncadd [#allocation4], %s101
      %s104 = sshll.u32 [#allocation7], 4
      %s105 = int_to_ptr.vmem [resolvable:$true] %s104
      %107 = dma.vmem_to_hbm [thread:$0]  %s105, 128, %s2, [#allocation4]
    $region21: #{tpu_custom_call.1} parent=1 // pred_fallthru
      _
    // Predicated region
    $region22: #{tpu_custom_call.1} parent=1 // pred_check
      _
    $region23: #{tpu_custom_call.1} parent=1 // pred_check_branch
      %109 = sbr.rel (0) target = $region25
    $region24: #{tpu_custom_call.1} parent=1 // pred_region
      %110 = dma.done [#allocation4], 128
    $region25: #{tpu_custom_call.1} parent=1 // pred_fallthru
      _
    %111 = vsyncpa [#allocation3], 1
    %112 = vsyncpa [#allocation6], 1
    %113 = vsyncpa [#allocation4], 1

</llo_original>
